<compile_context>
chip_gen: v6e
topology: v6e:2x2x1
jax: 0.10.0
libtpu: 0.0.40
codegen_flags: <defaults>
</compile_context>

<pallas_src>
import jax
import jax.numpy as jnp
from jax.experimental import pallas as pl
from jax.experimental.pallas import tpu as pltpu

_TARGET_BLOCK_BYTES = 4 * 1024 * 1024   # ~4 MiB per stream per block
_VMEM_LIMIT_BYTES = 32 * 1024 * 1024    # 2 streams x 2 buffers x 4 MiB = 16 MiB + headroom
_WIDTHS = (1024, 512, 256, 128)         # candidate lane-dense row widths


def _binary_sigmoid_math(x):
    """Forward value of the STE module: round-half-to-even(sigmoid(x)), NaN-propagating."""
    s = 1.0 / (1.0 + jnp.exp(-x))
    # s in [0, 1]: round-half-to-even(s) == 1 iff s > 0.5 (s == 0.5 rounds to 0).
    # The false-branch `s * 0` is 0 for finite s and NaN for NaN, matching
    # the PyTorch expression s + round(s) - s.
    return jnp.where(s > 0.5, jnp.ones_like(s), s * 0.0)


def _binary_sigmoid_kernel(x_ref, o_ref):
    o_ref[...] = _binary_sigmoid_math(x_ref[...]).astype(o_ref.dtype)


def binary_sigmoid(x: jax.Array) -> jax.Array:
    orig_shape = x.shape
    dtype = x.dtype
    n = x.size
    if n == 0:
        return x

    flat = x.reshape(-1)

    # Widest lane-dense width dividing n (fewer DMA descriptors, unmasked stores).
    width = 0
    for w in _WIDTHS:
        if n % w == 0:
            width = w
            break

    if width == 0:
        # Ragged element count (n % 128 != 0): padding before and slicing after a
        # Pallas call would add two extra full-tensor HBM passes to a memory-bound
        # op, so do the single-pass elementwise op directly in XLA instead.
        return _binary_sigmoid_math(flat).astype(dtype).reshape(orig_shape)

    rows = n // width
    x2d = flat.reshape(rows, width)           # contiguous reshape: free

    itemsize = x.dtype.itemsize
    # Minimum sublane granularity per dtype: 8 (f32), 16 (bf16), 32 (int8).
    sub = max(8, 32 // itemsize)
    # Dtype-aware row cap: hold block *bytes* ~constant at the 4 MiB target.
    max_tile_rows = max(sub, (_TARGET_BLOCK_BYTES // (width * itemsize)) // sub * sub)

    if rows <= sub:
        # Tiny tensor: a single full-extent block (always a legal block shape).
        tile_rows = rows
    else:
        # At least 2 grid steps so a v7x megacore can run both TensorCores,
        # capped at ~4 MiB/stream blocks to amortize the ~0.35 us per-step cost.
        half = pl.cdiv(rows, 2)
        half = pl.cdiv(half, sub) * sub        # sublane-aligned; trailing block may be partial
        tile_rows = min(half, max_tile_rows)

    grid = (pl.cdiv(rows, tile_rows),)

    out2d = pl.pallas_call(
        _binary_sigmoid_kernel,
        out_shape=jax.ShapeDtypeStruct((rows, width), dtype),
        grid=grid,
        in_specs=[pl.BlockSpec((tile_rows, width), lambda i: (i, 0))],
        out_specs=pl.BlockSpec((tile_rows, width), lambda i: (i, 0)),
        compiler_params=pltpu.CompilerParams(
            dimension_semantics=("parallel",),
            vmem_limit_bytes=_VMEM_LIMIT_BYTES,
        ),
    )(x2d)

    return out2d.reshape(orig_shape)


def _check(out, x):
    assert out.shape == x.shape and out.dtype == x.dtype
    assert bool(jnp.all((out == 0.0) | (out == 1.0))), "output not binary"
    ref = jnp.round(jax.nn.sigmoid(x)).astype(x.dtype)   # intended forward value
    # Ignore the degenerate |x| ~ 0 band where sigmoid rounds to exactly 0.5 in
    # finite precision (1-ulp implementation differences can flip it).
    ok = (out == ref) | (jnp.abs(x) < 1e-5)
    assert bool(jnp.all(ok)), "mismatch vs round(sigmoid(x))"


if __name__ == "__main__":
    key = jax.random.PRNGKey(0)
    k1, k2, k3 = jax.random.split(key, 3)

    # Primary CIFAR-style NCHW activation (single-block Pallas path).
    x = jax.random.normal(k1, (2, 4, 16, 16), dtype=jnp.float32) * 3.0
    out = jax.block_until_ready(binary_sigmoid(x))
    _check(out, x)

    # Moderate activation exercising the multi-step (megacore-splittable) grid.
    x_big = jax.random.normal(k2, (2, 64, 32, 32), dtype=jnp.float32) * 3.0
    out_big = jax.block_until_ready(binary_sigmoid(x_big))
    _check(out_big, x_big)

    # Ragged element count (n % 128 != 0) -> single-pass XLA fallback path.
    x_rag = jax.random.normal(k3, (3, 5, 7, 11), dtype=jnp.float32)
    out_rag = jax.block_until_ready(binary_sigmoid(x_rag))
    _check(out_rag, x_rag)

    print("KERNEL_OK")
</pallas_src>

<mosaic_0001>
module attributes {stable_mosaic.version = 11 : i64} {
  func.func @_binary_sigmoid_kernel(%arg0: i32, %arg1: memref<2x1024xf32, #tpu.memory_space<vmem>>, %arg2: memref<2x1024xf32, #tpu.memory_space<vmem>>) attributes {dimension_semantics = [#tpu.dimension_semantics<parallel>], iteration_bounds = array<i64: 1>, scalar_prefetch = 0 : i64, scratch_operands = 0 : i64, tpu.core_type = #tpu.core_type<tc>, window_params = [{transform_indices = @transform_0, window_bounds = array<i64: 2, 1024>}, {transform_indices = @transform_1, window_bounds = array<i64: 2, 1024>}]} {
    %c0 = arith.constant 0 : index
    %c0_0 = arith.constant 0 : index
    %0 = vector.load %arg1[%c0, %c0_0] : memref<2x1024xf32, #tpu.memory_space<vmem>>, vector<2x1024xf32>
    %cst = arith.constant 0.000000e+00 : f32
    %1 = vector.broadcast %cst : f32 to vector<2x1024xf32>
    %2 = arith.subf %1, %0 : vector<2x1024xf32>
    %3 = math.exp %2 : vector<2x1024xf32>
    %cst_1 = arith.constant 1.000000e+00 : f32
    %4 = vector.broadcast %cst_1 : f32 to vector<2x1024xf32>
    %5 = arith.addf %4, %3 : vector<2x1024xf32>
    %cst_2 = arith.constant 1.000000e+00 : f32
    %6 = vector.broadcast %cst_2 : f32 to vector<2x1024xf32>
    %7 = arith.divf %6, %5 : vector<2x1024xf32>
    %cst_3 = arith.constant 5.000000e-01 : f32
    %8 = vector.broadcast %cst_3 : f32 to vector<2x1024xf32>
    %9 = arith.cmpf ogt, %7, %8 : vector<2x1024xf32>
    %cst_4 = arith.constant 1.000000e+00 : f32
    %10 = vector.broadcast %cst_4 : f32 to vector<2x1024xf32>
    %cst_5 = arith.constant 0.000000e+00 : f32
    %11 = vector.broadcast %cst_5 : f32 to vector<2x1024xf32>
    %12 = arith.mulf %7, %11 : vector<2x1024xf32>
    %13 = arith.select %9, %10, %12 : vector<2x1024xi1>, vector<2x1024xf32>
    %c0_6 = arith.constant 0 : index
    %c0_7 = arith.constant 0 : index
    %14 = vector.load %arg2[%c0_6, %c0_7] : memref<2x1024xf32, #tpu.memory_space<vmem>>, vector<2x1024xf32>
    tpu.vector_store %arg2[%c0_6, %c0_7], %13 {strides = array<i32>} : memref<2x1024xf32, #tpu.memory_space<vmem>>, vector<2x1024xf32>,
    return
  }
  func.func @transform_0(%arg0: i32) -> (i32, i32) {
    %c0_i32 = arith.constant 0 : i32
    %c0_i32_0 = arith.constant 0 : i32
    return %arg0, %c0_i32 : i32, i32
  }
  func.func @transform_1(%arg0: i32) -> (i32, i32) {
    %c0_i32 = arith.constant 0 : i32
    %c0_i32_0 = arith.constant 0 : i32
    return %arg0, %c0_i32 : i32, i32
  }
}

</mosaic_0001>

<llo_original>
// kernel: tpu_custom_call.1
$region0: #{tpu_custom_call.1}
  #allocation0 [shape = 'u32[]', space=smem, size = 0x4, offset = 0x4, fixed_abs, tag = 'smem constant byte address 0x4 - core index']
  #allocation1 [shape = 'u32[144,128]{1,0:T(1,128)}', space=vmem, size = 0x12000, scoped, tag = 'internal scratch']
  %s0 = inlined_call_operand.hbm [shape: f32[2,1024], index: 0, kind: input, shape index: {}]
  %s1 = inlined_call_operand.hbm [shape: f32[2,1024], index: 1, kind: output, shape index: {}]
  %s2 = sld [smem:[#allocation0]]
  $region18: #{tpu_custom_call.1} parent=0
    _
  %s4 = ssub.s32 1, %s2
  %s5 = scalar_select 0, %s4, %s2
  $region1: #{tpu_custom_call.1} parent=0
    #allocation2 [shape = 'u8[8192]{0}', space=vmem, size = 0x2000, scoped, tag = 'input window, operand 0, single buffered']
    #allocation3 [shape = 's32[1]{0}', space=sflag, size = 0x4, scoped, tag = 'scoped memory for tpu_custom_call.1']
    #allocation4 [shape = 's32[1]{0}', space=sflag, size = 0x4, scoped, tag = 'scoped memory for tpu_custom_call.1']
    #allocation5 [shape = 'u8[8192]{0}', space=vmem, size = 0x2000, scoped, tag = 'output window, operand 0, single buffered']
    %6 = vsyncpa [#allocation3], 0
    %7 = vsyncpa [#allocation4], 0
    // Predicated region
    $region2: #{tpu_custom_call.1} parent=1 // pred_check
      _
    $region3: #{tpu_custom_call.1} parent=1 // pred_check_branch
      %9 = sbr.rel (0) target = $region5
    $region4: #{tpu_custom_call.1} parent=1 // pred_region
      %s11 = ssub.s32 256, 256
      %12 = vsyncadd [#allocation3], %s11
      %s14 = sshll.u32 [#allocation2], 4
      %s15 = int_to_ptr.vmem [resolvable:$true] %s14
      %17 = dma.hbm_to_vmem [thread:$0]  %s0, 256, %s15, [#allocation3]
    $region5: #{tpu_custom_call.1} parent=1 // pred_fallthru
      _
    // Predicated region
    $region6: #{tpu_custom_call.1} parent=1 // pred_check
      _
    $region7: #{tpu_custom_call.1} parent=1 // pred_check_branch
      %19 = sbr.rel (0) target = $region9
    $region8: #{tpu_custom_call.1} parent=1 // pred_region
      %20 = dma.done [#allocation3], 256
    $region9: #{tpu_custom_call.1} parent=1 // pred_fallthru
      _
    %v21 = vld [vmem:[#allocation2] sm:$0xff]
    %v22 = vld [vmem:[#allocation2 + $0x8] sm:$0xff]
    %v23 = vsub.f32 0.0, %v21
    %v24 = vsub.f32 0.0, %v22
    %v25 = vmul.f32 %v23, 1.442695
    %v26 = vpow.pop %v25
    %v27 = vmul.f32 %v24, 1.442695
    %v28 = vpow.pop %v27
    %v29 = vadd.f32 %v26, 1.0
    %v30 = vadd.f32 %v28, 1.0
    %v31 = vrcp.pop %v29
    %v32 = vmul.f32 1.0, %v31
    %v33 = vrcp.pop %v30
    %v34 = vmul.f32 1.0, %v33
    %vm35 = vcmp.gt.f32.partialorder %v32, 0.5
    %vm36 = vcmp.gt.f32.partialorder %v34, 0.5
    %v37 = vmul.f32 %v32, 0.0
    %v38 = vmul.f32 %v34, 0.0
    %v39 = vsel %vm35, 1.0, %v37
    %v40 = vsel %vm36, 1.0, %v38
    %41 = vst [vmem:[#allocation5] sm:$0xff] %v39
    %42 = vst [vmem:[#allocation5 + $0x8] sm:$0xff] %v40
    // Predicated region
    $region10: #{tpu_custom_call.1} parent=1 // pred_check
      _
    $region11: #{tpu_custom_call.1} parent=1 // pred_check_branch
      %44 = sbr.rel (0) target = $region13
    $region12: #{tpu_custom_call.1} parent=1 // pred_region
      %s46 = ssub.s32 256, 256
      %47 = vsyncadd [#allocation4], %s46
      %s49 = sshll.u32 [#allocation5], 4
      %s50 = int_to_ptr.vmem [resolvable:$true] %s49
      %52 = dma.vmem_to_hbm [thread:$0]  %s50, 256, %s1, [#allocation4]
    $region13: #{tpu_custom_call.1} parent=1 // pred_fallthru
      _
    // Predicated region
    $region14: #{tpu_custom_call.1} parent=1 // pred_check
      _
    $region15: #{tpu_custom_call.1} parent=1 // pred_check_branch
      %54 = sbr.rel (0) target = $region17
    $region16: #{tpu_custom_call.1} parent=1 // pred_region
      %55 = dma.done [#allocation4], 256
    $region17: #{tpu_custom_call.1} parent=1 // pred_fallthru
      _
    %56 = vsyncpa [#allocation3], 1
    %57 = vsyncpa [#allocation4], 1

</llo_original>
